<compile_context>
chip_gen: v5e
topology: v5e:2x2
jax: 0.10.0
libtpu: 0.0.40
codegen_flags: <defaults>
</compile_context>

<pallas_src>
import jax
import jax.numpy as jnp
from jax.experimental import pallas as pl
from jax.experimental.pallas import tpu as pltpu

ALPHA = 0.5
BETA = 0.5

LANE = 512            # last-dim width (multiple of 128 -> unmasked vld/vst)
ROWS_PER_TILE = 1024  # rows per grid step (multiple of 32 for any dtype tiling)


def _cdiv(a, b):
    return -(-a // b)


def _round_up(a, b):
    return _cdiv(a, b) * b


def _supervoxel_loss_kernel(preds_ref, targets_ref, weight_ref, out_ref):
    x = preds_ref[...].astype(jnp.float32)    # logits           (TR, LANE)
    z = targets_ref[...].astype(jnp.float32)  # {0,1} targets    (TR, LANE)
    w = weight_ref[...].astype(jnp.float32)   # (1-a)+a*mask, 0 on padding

    # BCEWithLogitsLoss(reduction='none'), numerically stable form.
    voxel_loss = jnp.maximum(x, 0.0) - x * z + jnp.log1p(jnp.exp(-jnp.abs(x)))

    # (1-alpha)*loss + alpha*mask*loss, with the weight pre-folded host-side.
    weighted = voxel_loss * w

    # Per-tile partial sums, reduced down to one (8, LANE) vreg-aligned block.
    tr, lane = weighted.shape
    out_ref[...] = jnp.sum(weighted.reshape(tr // 8, 8, lane), axis=0)


def supervoxel_loss(preds, targets, critical_masks, *, alpha=ALPHA,
                    lane=LANE, rows_per_tile=ROWS_PER_TILE):
    """preds, targets: (B, 1, H, W).  critical_masks: (B, H, W).

    Returns the scalar mean loss (return_mask=False path of the module).
    """
    B, C, H, W = preds.shape
    assert C == 1, "module assumes a single channel"
    assert critical_masks.shape == (B, H, W)
    n_elem = B * C * H * W

    # Fold the structure re-weighting into one array:
    #   weight = (1 - alpha) + alpha * mask   (bf16 exact for {0, 0.5, 1}).
    weight = ((1.0 - alpha)
              + alpha * critical_masks.astype(jnp.float32)).astype(jnp.bfloat16)

    # Flatten to 1-D; keep preds in the model's dtype (no f32 up-cast copies),
    # narrow targets to bf16 ({0,1} exact).  int8 targets would also work.
    p = preds.reshape(-1)
    t = targets.reshape(-1).astype(jnp.bfloat16)
    w = weight.reshape(-1)

    # Lane-dense (rows, lane) layout, rows padded to a whole number of tiles.
    rows_needed = _cdiv(n_elem, lane)
    tr = min(rows_per_tile, _round_up(rows_needed, 32))
    n_tiles = _cdiv(rows_needed, tr)
    padded_rows = n_tiles * tr
    pad = padded_rows * lane - n_elem
    if pad:
        # Zero weight on padded elements -> they contribute nothing to the sum.
        p = jnp.pad(p, (0, pad))
        t = jnp.pad(t, (0, pad))
        w = jnp.pad(w, (0, pad))

    p2 = p.reshape(padded_rows, lane)
    t2 = t.reshape(padded_rows, lane)
    w2 = w.reshape(padded_rows, lane)

    in_bytes = n_elem * (p2.dtype.itemsize + t2.dtype.itemsize + w2.dtype.itemsize)
    out_bytes = n_tiles * 8 * lane * 4

    partials = pl.pallas_call(
        _supervoxel_loss_kernel,
        out_shape=jax.ShapeDtypeStruct((n_tiles * 8, lane), jnp.float32),
        grid=(n_tiles,),
        in_specs=[
            pl.BlockSpec((tr, lane), lambda i: (i, 0)),
            pl.BlockSpec((tr, lane), lambda i: (i, 0)),
            pl.BlockSpec((tr, lane), lambda i: (i, 0)),
        ],
        out_specs=pl.BlockSpec((8, lane), lambda i: (i, 0)),
        compiler_params=pltpu.CompilerParams(
            dimension_semantics=("parallel",),
        ),
        cost_estimate=pl.CostEstimate(
            flops=7 * n_elem,
            transcendentals=2 * n_elem,
            bytes_accessed=in_bytes + out_bytes,
        ),
    )(p2, t2, w2)

    # Tiny final reduction + mean scaling (true element count, not padded).
    return jnp.sum(partials) * (1.0 / n_elem)


def _reference_loss(preds, targets, critical_masks, alpha=ALPHA):
    """Pure-jnp reference of the original module math (correctness check)."""
    x = preds.astype(jnp.float32)
    z = targets.astype(jnp.float32)
    loss = jnp.maximum(x, 0.0) - x * z + jnp.log1p(jnp.exp(-jnp.abs(x)))
    m = critical_masks[:, None, :, :].astype(jnp.float32)
    weighted = (1.0 - alpha) * loss + alpha * m * loss
    return jnp.mean(weighted)


if __name__ == "__main__":
    B, C, H, W = 2, 1, 16, 16
    key = jax.random.PRNGKey(0)
    k_pred, k_tgt, k_pos, k_neg = jax.random.split(key, 4)

    # Raw logits from a "model".
    preds = jax.random.normal(k_pred, (B, C, H, W), dtype=jnp.float32)
    # Binary ground-truth segmentation.
    targets = (jax.random.uniform(k_tgt, (B, C, H, W)) > 0.5).astype(jnp.float32)

    # Deterministic stand-in for the critical-component masks:
    #   beta * negative_critical + (1 - beta) * positive_critical
    # (the real masks would come from connected-component analysis on CPU).
    pos_crit = (jax.random.uniform(k_pos, (B, H, W)) > 0.8).astype(jnp.float32)
    neg_crit = (jax.random.uniform(k_neg, (B, H, W)) > 0.8).astype(jnp.float32)
    critical_masks = (1.0 - BETA) * pos_crit + BETA * neg_crit

    result = supervoxel_loss(preds, targets, critical_masks, alpha=ALPHA)
    result = jax.block_until_ready(result)

    ref = _reference_loss(preds, targets, critical_masks, alpha=ALPHA)
    assert jnp.allclose(result, ref, rtol=1e-5, atol=1e-5), (result, ref)

    print("KERNEL_OK")
</pallas_src>

<mosaic_0001>
module attributes {stable_mosaic.version = 11 : i64} {
  func.func @_supervoxel_loss_kernel(%arg0: i32, %arg1: memref<32x512xf32, #tpu.memory_space<vmem>>, %arg2: memref<32x512xbf16, #tpu.memory_space<vmem>>, %arg3: memref<32x512xbf16, #tpu.memory_space<vmem>>, %arg4: memref<8x512xf32, #tpu.memory_space<vmem>>) attributes {dimension_semantics = [#tpu.dimension_semantics<parallel>], iteration_bounds = array<i64: 1>, scalar_prefetch = 0 : i64, scratch_operands = 0 : i64, tpu.core_type = #tpu.core_type<tc>, window_params = [{transform_indices = @transform_0, window_bounds = array<i64: 32, 512>}, {transform_indices = @transform_1, window_bounds = array<i64: 32, 512>}, {transform_indices = @transform_2, window_bounds = array<i64: 32, 512>}, {transform_indices = @transform_3, window_bounds = array<i64: 8, 512>}]} {
    %c0 = arith.constant 0 : index
    %c0_0 = arith.constant 0 : index
    %0 = vector.load %arg1[%c0, %c0_0] : memref<32x512xf32, #tpu.memory_space<vmem>>, vector<32x512xf32>
    %c0_1 = arith.constant 0 : index
    %c0_2 = arith.constant 0 : index
    %1 = vector.load %arg2[%c0_1, %c0_2] : memref<32x512xbf16, #tpu.memory_space<vmem>>, vector<32x512xbf16>
    %2 = arith.extf %1 : vector<32x512xbf16> to vector<32x512xf32>
    %c0_3 = arith.constant 0 : index
    %c0_4 = arith.constant 0 : index
    %3 = vector.load %arg3[%c0_3, %c0_4] : memref<32x512xbf16, #tpu.memory_space<vmem>>, vector<32x512xbf16>
    %4 = arith.extf %3 : vector<32x512xbf16> to vector<32x512xf32>
    %cst = arith.constant 0.000000e+00 : f32
    %5 = vector.broadcast %cst : f32 to vector<32x512xf32>
    %6 = arith.maximumf %0, %5 : vector<32x512xf32>
    %7 = arith.mulf %0, %2 : vector<32x512xf32>
    %8 = arith.subf %6, %7 : vector<32x512xf32>
    %9 = math.absf %0 : vector<32x512xf32>
    %cst_5 = arith.constant 0.000000e+00 : f32
    %10 = vector.broadcast %cst_5 : f32 to vector<32x512xf32>
    %11 = arith.subf %10, %9 : vector<32x512xf32>
    %12 = math.exp %11 : vector<32x512xf32>
    %13 = math.log1p %12 : vector<32x512xf32>
    %14 = arith.addf %8, %13 : vector<32x512xf32>
    %15 = arith.mulf %14, %4 : vector<32x512xf32>
    %16 = vector.shape_cast %15 : vector<32x512xf32> to vector<4x8x512xf32>
    %cst_6 = arith.constant dense<0.000000e+00> : vector<8x512xf32>
    %17 = vector.multi_reduction <add>, %16, %cst_6 [0] : vector<4x8x512xf32> to vector<8x512xf32>
    %c0_7 = arith.constant 0 : index
    %c0_8 = arith.constant 0 : index
    %18 = vector.load %arg4[%c0_7, %c0_8] : memref<8x512xf32, #tpu.memory_space<vmem>>, vector<8x512xf32>
    tpu.vector_store %arg4[%c0_7, %c0_8], %17 {strides = array<i32>} : memref<8x512xf32, #tpu.memory_space<vmem>>, vector<8x512xf32>,
    return
  }
  func.func @transform_0(%arg0: i32) -> (i32, i32) {
    %c0_i32 = arith.constant 0 : i32
    %c0_i32_0 = arith.constant 0 : i32
    return %arg0, %c0_i32 : i32, i32
  }
  func.func @transform_1(%arg0: i32) -> (i32, i32) {
    %c0_i32 = arith.constant 0 : i32
    %c0_i32_0 = arith.constant 0 : i32
    return %arg0, %c0_i32 : i32, i32
  }
  func.func @transform_2(%arg0: i32) -> (i32, i32) {
    %c0_i32 = arith.constant 0 : i32
    %c0_i32_0 = arith.constant 0 : i32
    return %arg0, %c0_i32 : i32, i32
  }
  func.func @transform_3(%arg0: i32) -> (i32, i32) {
    %c0_i32 = arith.constant 0 : i32
    %c0_i32_0 = arith.constant 0 : i32
    return %arg0, %c0_i32 : i32, i32
  }
}

</mosaic_0001>

<llo_original>
// kernel: tpu_custom_call.1
$region0: #{tpu_custom_call.1}
  #allocation0 [shape = 'u32[]', space=smem, size = 0x4, offset = 0x4, fixed_abs, tag = 'smem constant byte address 0x4 - core index']
  #allocation1 [shape = 'u32[72,128]{1,0:T(1,128)}', space=vmem, size = 0x9000, scoped, tag = 'internal scratch']
  %s0 = inlined_call_operand.hbm [shape: f32[32,512], index: 0, kind: input, shape index: {}]
  %s1 = inlined_call_operand.hbm [shape: bf16[32,512], index: 1, kind: input, shape index: {}]
  %s2 = inlined_call_operand.hbm [shape: bf16[32,512], index: 2, kind: input, shape index: {}]
  %s3 = inlined_call_operand.hbm [shape: f32[8,512], index: 3, kind: output, shape index: {}]
  %s4 = sld [smem:[#allocation0]]
  $region34: #{tpu_custom_call.1} parent=0
    _
  %s6 = ssub.s32 1, %s4
  %s7 = scalar_select 0, %s6, %s4
  $region1: #{tpu_custom_call.1} parent=0
    #allocation2 [shape = 'u8[65536]{0}', space=vmem, size = 0x10000, scoped, tag = 'input window, operand 0, single buffered']
    #allocation3 [shape = 's32[1]{0}', space=sflag, size = 0x4, scoped, tag = 'scoped memory for tpu_custom_call.1']
    #allocation4 [shape = 's32[1]{0}', space=sflag, size = 0x4, scoped, tag = 'scoped memory for tpu_custom_call.1']
    #allocation5 [shape = 'u8[32768]{0}', space=vmem, size = 0x8000, scoped, tag = 'input window, operand 1, single buffered']
    #allocation6 [shape = 's32[1]{0}', space=sflag, size = 0x4, scoped, tag = 'scoped memory for tpu_custom_call.1']
    #allocation7 [shape = 'u8[32768]{0}', space=vmem, size = 0x8000, scoped, tag = 'input window, operand 2, single buffered']
    #allocation8 [shape = 'u8[16384]{0}', space=vmem, size = 0x4000, scoped, tag = 'output window, operand 0, single buffered']
    %8 = vsyncpa [#allocation3], 0
    %9 = vsyncpa [#allocation6], 0
    %10 = vsyncpa [#allocation4], 0
    // Predicated region
    $region2: #{tpu_custom_call.1} parent=1 // pred_check
      _
    $region3: #{tpu_custom_call.1} parent=1 // pred_check_branch
      %12 = sbr.rel (0) target = $region5
    $region4: #{tpu_custom_call.1} parent=1 // pred_region
      %14 = vsyncadd [#allocation3], 0
      %s15 = sshll.u32 %s0, 4
      %s16 = int_to_ptr.hbm [resolvable:$true] %s15
      %s17 = sshll.u32 [#allocation2], 4
      %s18 = int_to_ptr.vmem [resolvable:$true] %s17
      %23 = dma.hbm_to_vmem [thread:$0]  %s16, 2048, %s18, [#allocation3], 512, 512, 32
    $region5: #{tpu_custom_call.1} parent=1 // pred_fallthru
      _
    // Predicated region
    $region6: #{tpu_custom_call.1} parent=1 // pred_check
      _
    $region7: #{tpu_custom_call.1} parent=1 // pred_check_branch
      %25 = sbr.rel (0) target = $region9
    $region8: #{tpu_custom_call.1} parent=1 // pred_region
      %27 = vsyncadd [#allocation6], 0
      %s28 = sshll.u32 %s1, 4
      %s29 = int_to_ptr.hbm [resolvable:$true] %s28
      %s30 = sshll.u32 [#allocation5], 4
      %s31 = int_to_ptr.vmem [resolvable:$true] %s30
      %36 = dma.hbm_to_vmem [thread:$0]  %s29, 1024, %s31, [#allocation6], 256, 256, 16
    $region9: #{tpu_custom_call.1} parent=1 // pred_fallthru
      _
    // Predicated region
    $region10: #{tpu_custom_call.1} parent=1 // pred_check
      _
    $region11: #{tpu_custom_call.1} parent=1 // pred_check_branch
      %38 = sbr.rel (0) target = $region13
    $region12: #{tpu_custom_call.1} parent=1 // pred_region
      %40 = vsyncadd [#allocation6], 0
      %s41 = sshll.u32 %s2, 4
      %s42 = int_to_ptr.hbm [resolvable:$true] %s41
      %s43 = sshll.u32 [#allocation7], 4
      %s44 = int_to_ptr.vmem [resolvable:$true] %s43
      %49 = dma.hbm_to_vmem [thread:$0]  %s42, 1024, %s44, [#allocation6], 256, 256, 16
    $region13: #{tpu_custom_call.1} parent=1 // pred_fallthru
      _
    // Predicated region
    $region14: #{tpu_custom_call.1} parent=1 // pred_check
      _
    $region15: #{tpu_custom_call.1} parent=1 // pred_check_branch
      %51 = sbr.rel (0) target = $region17
    $region16: #{tpu_custom_call.1} parent=1 // pred_region
      %53 = dma.done [#allocation3], 2048
    $region17: #{tpu_custom_call.1} parent=1 // pred_fallthru
      _
    // Predicated region
    $region18: #{tpu_custom_call.1} parent=1 // pred_check
      _
    $region19: #{tpu_custom_call.1} parent=1 // pred_check_branch
      %55 = sbr.rel (0) target = $region21
    $region20: #{tpu_custom_call.1} parent=1 // pred_region
      %57 = dma.done [#allocation6], 1024
    $region21: #{tpu_custom_call.1} parent=1 // pred_fallthru
      _
    // Predicated region
    $region22: #{tpu_custom_call.1} parent=1 // pred_check
      _
    $region23: #{tpu_custom_call.1} parent=1 // pred_check_branch
      %59 = sbr.rel (0) target = $region25
    $region24: #{tpu_custom_call.1} parent=1 // pred_region
      %61 = dma.done [#allocation6], 1024
    $region25: #{tpu_custom_call.1} parent=1 // pred_fallthru
      _
    %v62 = vld [vmem:[#allocation2] sm:$0xff]
    %v63 = vld [vmem:[#allocation2 + $0x8] sm:$0xff]
    %v64 = vld [vmem:[#allocation2 + $0x10] sm:$0xff]
    %v65 = vld [vmem:[#allocation2 + $0x18] sm:$0xff]
    %v66 = vld [vmem:[#allocation2 + $0x20] sm:$0xff]
    %v67 = vld [vmem:[#allocation2 + $0x28] sm:$0xff]
    %v68 = vld [vmem:[#allocation2 + $0x30] sm:$0xff]
    %v69 = vld [vmem:[#allocation2 + $0x38] sm:$0xff]
    %v70 = vld [vmem:[#allocation2 + $0x40] sm:$0xff]
    %v71 = vld [vmem:[#allocation2 + $0x48] sm:$0xff]
    %v72 = vld [vmem:[#allocation2 + $0x50] sm:$0xff]
    %v73 = vld [vmem:[#allocation2 + $0x58] sm:$0xff]
    %v74 = vld [vmem:[#allocation2 + $0x60] sm:$0xff]
    %v75 = vld [vmem:[#allocation2 + $0x68] sm:$0xff]
    %v76 = vld [vmem:[#allocation2 + $0x70] sm:$0xff]
    %v77 = vld [vmem:[#allocation2 + $0x78] sm:$0xff]
    %v78 = vld [vmem:[#allocation5] sm:$0xff]
    %v79 = vld [vmem:[#allocation5 + $0x8] sm:$0xff]
    %v80 = vld [vmem:[#allocation5 + $0x10] sm:$0xff]
    %v81 = vld [vmem:[#allocation5 + $0x18] sm:$0xff]
    %v82 = vld [vmem:[#allocation5 + $0x20] sm:$0xff]
    %v83 = vld [vmem:[#allocation5 + $0x28] sm:$0xff]
    %v84 = vld [vmem:[#allocation5 + $0x30] sm:$0xff]
    %v85 = vld [vmem:[#allocation5 + $0x38] sm:$0xff]
    %v86 = vunpack.c.l.bf16 %v78
    %v87 = vunpack.c.h.bf16 %v78
    %v88 = vunpack.c.l.bf16 %v79
    %v89 = vunpack.c.h.bf16 %v79
    %v90 = vunpack.c.l.bf16 %v80
    %v91 = vunpack.c.h.bf16 %v80
    %v92 = vunpack.c.l.bf16 %v81
    %v93 = vunpack.c.h.bf16 %v81
    %v94 = vunpack.c.l.bf16 %v82
    %v95 = vunpack.c.h.bf16 %v82
    %v96 = vunpack.c.l.bf16 %v83
    %v97 = vunpack.c.h.bf16 %v83
    %v98 = vunpack.c.l.bf16 %v84
    %v99 = vunpack.c.h.bf16 %v84
    %v100 = vunpack.c.l.bf16 %v85
    %v101 = vunpack.c.h.bf16 %v85
    %v102 = vld [vmem:[#allocation7] sm:$0xff]
    %v103 = vld [vmem:[#allocation7 + $0x8] sm:$0xff]
    %v104 = vld [vmem:[#allocation7 + $0x10] sm:$0xff]
    %v105 = vld [vmem:[#allocation7 + $0x18] sm:$0xff]
    %v106 = vld [vmem:[#allocation7 + $0x20] sm:$0xff]
    %v107 = vld [vmem:[#allocation7 + $0x28] sm:$0xff]
    %v108 = vld [vmem:[#allocation7 + $0x30] sm:$0xff]
    %v109 = vld [vmem:[#allocation7 + $0x38] sm:$0xff]
    %v110 = vunpack.c.l.bf16 %v102
    %v111 = vunpack.c.h.bf16 %v102
    %v112 = vunpack.c.l.bf16 %v103
    %v113 = vunpack.c.h.bf16 %v103
    %v114 = vunpack.c.l.bf16 %v104
    %v115 = vunpack.c.h.bf16 %v104
    %v116 = vunpack.c.l.bf16 %v105
    %v117 = vunpack.c.h.bf16 %v105
    %v118 = vunpack.c.l.bf16 %v106
    %v119 = vunpack.c.h.bf16 %v106
    %v120 = vunpack.c.l.bf16 %v107
    %v121 = vunpack.c.h.bf16 %v107
    %v122 = vunpack.c.l.bf16 %v108
    %v123 = vunpack.c.h.bf16 %v108
    %v124 = vunpack.c.l.bf16 %v109
    %v125 = vunpack.c.h.bf16 %v109
    %v126 = vmax.f32 %v62, 0.0
    %v127 = vmax.f32 %v63, 0.0
    %v128 = vmax.f32 %v64, 0.0
    %v129 = vmax.f32 %v65, 0.0
    %v130 = vmax.f32 %v66, 0.0
    %v131 = vmax.f32 %v67, 0.0
    %v132 = vmax.f32 %v68, 0.0
    %v133 = vmax.f32 %v69, 0.0
    %v134 = vmax.f32 %v70, 0.0
    %v135 = vmax.f32 %v71, 0.0
    %v136 = vmax.f32 %v72, 0.0
    %v137 = vmax.f32 %v73, 0.0
    %v138 = vmax.f32 %v74, 0.0
    %v139 = vmax.f32 %v75, 0.0
    %v140 = vmax.f32 %v76, 0.0
    %v141 = vmax.f32 %v77, 0.0
    %v142 = vmul.f32 %v62, %v86
    %v143 = vmul.f32 %v63, %v87
    %v144 = vmul.f32 %v64, %v88
    %v145 = vmul.f32 %v65, %v89
    %v146 = vmul.f32 %v66, %v90
    %v147 = vmul.f32 %v67, %v91
    %v148 = vmul.f32 %v68, %v92
    %v149 = vmul.f32 %v69, %v93
    %v150 = vmul.f32 %v70, %v94
    %v151 = vmul.f32 %v71, %v95
    %v152 = vmul.f32 %v72, %v96
    %v153 = vmul.f32 %v73, %v97
    %v154 = vmul.f32 %v74, %v98
    %v155 = vmul.f32 %v75, %v99
    %v156 = vmul.f32 %v76, %v100
    %v157 = vmul.f32 %v77, %v101
    %v158 = vsub.f32 %v126, %v142
    %v159 = vsub.f32 %v127, %v143
    %v160 = vsub.f32 %v128, %v144
    %v161 = vsub.f32 %v129, %v145
    %v162 = vsub.f32 %v130, %v146
    %v163 = vsub.f32 %v131, %v147
    %v164 = vsub.f32 %v132, %v148
    %v165 = vsub.f32 %v133, %v149
    %v166 = vsub.f32 %v134, %v150
    %v167 = vsub.f32 %v135, %v151
    %v168 = vsub.f32 %v136, %v152
    %v169 = vsub.f32 %v137, %v153
    %v170 = vsub.f32 %v138, %v154
    %v171 = vsub.f32 %v139, %v155
    %v172 = vsub.f32 %v140, %v156
    %v173 = vsub.f32 %v141, %v157
    %v174 = vand.u32 2147483647, %v62
    %v175 = vand.u32 2147483647, %v63
    %v176 = vand.u32 2147483647, %v64
    %v177 = vand.u32 2147483647, %v65
    %v178 = vand.u32 2147483647, %v66
    %v179 = vand.u32 2147483647, %v67
    %v180 = vand.u32 2147483647, %v68
    %v181 = vand.u32 2147483647, %v69
    %v182 = vand.u32 2147483647, %v70
    %v183 = vand.u32 2147483647, %v71
    %v184 = vand.u32 2147483647, %v72
    %v185 = vand.u32 2147483647, %v73
    %v186 = vand.u32 2147483647, %v74
    %v187 = vand.u32 2147483647, %v75
    %v188 = vand.u32 2147483647, %v76
    %v189 = vand.u32 2147483647, %v77
    %v190 = vsub.f32 0.0, %v174
    %v191 = vsub.f32 0.0, %v175
    %v192 = vsub.f32 0.0, %v176
    %v193 = vsub.f32 0.0, %v177
    %v194 = vsub.f32 0.0, %v178
    %v195 = vsub.f32 0.0, %v179
    %v196 = vsub.f32 0.0, %v180
    %v197 = vsub.f32 0.0, %v181
    %v198 = vsub.f32 0.0, %v182
    %v199 = vsub.f32 0.0, %v183
    %v200 = vsub.f32 0.0, %v184
    %v201 = vsub.f32 0.0, %v185
    %v202 = vsub.f32 0.0, %v186
    %v203 = vsub.f32 0.0, %v187
    %v204 = vsub.f32 0.0, %v188
    %v205 = vsub.f32 0.0, %v189
    %v206 = vmul.f32 %v190, 1.442695
    %v207 = vpow.pop %v206
    %v208 = vmul.f32 %v191, 1.442695
    %v209 = vpow.pop %v208
    %v210 = vmul.f32 %v192, 1.442695
    %v211 = vpow.pop %v210
    %v212 = vmul.f32 %v193, 1.442695
    %v213 = vpow.pop %v212
    %v214 = vmul.f32 %v194, 1.442695
    %v215 = vpow.pop %v214
    %v216 = vmul.f32 %v195, 1.442695
    %v217 = vpow.pop %v216
    %v218 = vmul.f32 %v196, 1.442695
    %v219 = vpow.pop %v218
    %v220 = vmul.f32 %v197, 1.442695
    %v221 = vpow.pop %v220
    %v222 = vmul.f32 %v198, 1.442695
    %v223 = vpow.pop %v222
    %v224 = vmul.f32 %v199, 1.442695
    %v225 = vpow.pop %v224
    %v226 = vmul.f32 %v200, 1.442695
    %v227 = vpow.pop %v226
    %v228 = vmul.f32 %v201, 1.442695
    %v229 = vpow.pop %v228
    %v230 = vmul.f32 %v202, 1.442695
    %v231 = vpow.pop %v230
    %v232 = vmul.f32 %v203, 1.442695
    %v233 = vpow.pop %v232
    %v234 = vmul.f32 %v204, 1.442695
    %v235 = vpow.pop %v234
    %v236 = vmul.f32 %v205, 1.442695
    %v237 = vpow.pop %v236
    %v238 = vadd.f32 %v207, 1.0
    %v239 = vlog2.pop %v238
    %v240 = vmul.f32 %v239, 0.6931472
    %v241 = vmul.f32 -0.5, %v207
    %v242 = vadd.f32 %v241, 1.0
    %v243 = vmul.f32 %v242, %v207
    %v244 = vand.u32 2147483647, %v207
    %vm245 = vcmp.lt.f32.partialorder %v244, 0.0004427343
    %v246 = vsel %vm245, %v243, %v240
    %v247 = vadd.f32 %v209, 1.0
    %v248 = vlog2.pop %v247
    %v249 = vmul.f32 %v248, 0.6931472
    %v250 = vmul.f32 -0.5, %v209
    %v251 = vadd.f32 %v250, 1.0
    %v252 = vmul.f32 %v251, %v209
    %v253 = vand.u32 2147483647, %v209
    %vm254 = vcmp.lt.f32.partialorder %v253, 0.0004427343
    %v255 = vsel %vm254, %v252, %v249
    %v256 = vadd.f32 %v211, 1.0
    %v257 = vlog2.pop %v256
    %v258 = vmul.f32 %v257, 0.6931472
    %v259 = vmul.f32 -0.5, %v211
    %v260 = vadd.f32 %v259, 1.0
    %v261 = vmul.f32 %v260, %v211
    %v262 = vand.u32 2147483647, %v211
    %vm263 = vcmp.lt.f32.partialorder %v262, 0.0004427343
    %v264 = vsel %vm263, %v261, %v258
    %v265 = vadd.f32 %v213, 1.0
    %v266 = vlog2.pop %v265
    %v267 = vmul.f32 %v266, 0.6931472
    %v268 = vmul.f32 -0.5, %v213
    %v269 = vadd.f32 %v268, 1.0
    %v270 = vmul.f32 %v269, %v213
    %v271 = vand.u32 2147483647, %v213
    %vm272 = vcmp.lt.f32.partialorder %v271, 0.0004427343
    %v273 = vsel %vm272, %v270, %v267
    %v274 = vadd.f32 %v215, 1.0
    %v275 = vlog2.pop %v274
    %v276 = vmul.f32 %v275, 0.6931472
    %v277 = vmul.f32 -0.5, %v215
    %v278 = vadd.f32 %v277, 1.0
    %v279 = vmul.f32 %v278, %v215
    %v280 = vand.u32 2147483647, %v215
    %vm281 = vcmp.lt.f32.partialorder %v280, 0.0004427343
    %v282 = vsel %vm281, %v279, %v276
    %v283 = vadd.f32 %v217, 1.0
    %v284 = vlog2.pop %v283
    %v285 = vmul.f32 %v284, 0.6931472
    %v286 = vmul.f32 -0.5, %v217
    %v287 = vadd.f32 %v286, 1.0
    %v288 = vmul.f32 %v287, %v217
    %v289 = vand.u32 2147483647, %v217
    %vm290 = vcmp.lt.f32.partialorder %v289, 0.0004427343
    %v291 = vsel %vm290, %v288, %v285
    %v292 = vadd.f32 %v219, 1.0
    %v293 = vlog2.pop %v292
    %v294 = vmul.f32 %v293, 0.6931472
    %v295 = vmul.f32 -0.5, %v219
    %v296 = vadd.f32 %v295, 1.0
    %v297 = vmul.f32 %v296, %v219
    %v298 = vand.u32 2147483647, %v219
    %vm299 = vcmp.lt.f32.partialorder %v298, 0.0004427343
    %v300 = vsel %vm299, %v297, %v294
    %v301 = vadd.f32 %v221, 1.0
    %v302 = vlog2.pop %v301
    %v303 = vmul.f32 %v302, 0.6931472
    %v304 = vmul.f32 -0.5, %v221
    %v305 = vadd.f32 %v304, 1.0
    %v306 = vmul.f32 %v305, %v221
    %v307 = vand.u32 2147483647, %v221
    %vm308 = vcmp.lt.f32.partialorder %v307, 0.0004427343
    %v309 = vsel %vm308, %v306, %v303
    %v310 = vadd.f32 %v223, 1.0
    %v311 = vlog2.pop %v310
    %v312 = vmul.f32 %v311, 0.6931472
    %v313 = vmul.f32 -0.5, %v223
    %v314 = vadd.f32 %v313, 1.0
    %v315 = vmul.f32 %v314, %v223
    %v316 = vand.u32 2147483647, %v223
    %vm317 = vcmp.lt.f32.partialorder %v316, 0.0004427343
    %v318 = vsel %vm317, %v315, %v312
    %v319 = vadd.f32 %v225, 1.0
    %v320 = vlog2.pop %v319
    %v321 = vmul.f32 %v320, 0.6931472
    %v322 = vmul.f32 -0.5, %v225
    %v323 = vadd.f32 %v322, 1.0
    %v324 = vmul.f32 %v323, %v225
    %v325 = vand.u32 2147483647, %v225
    %vm326 = vcmp.lt.f32.partialorder %v325, 0.0004427343
    %v327 = vsel %vm326, %v324, %v321
    %v328 = vadd.f32 %v227, 1.0
    %v329 = vlog2.pop %v328
    %v330 = vmul.f32 %v329, 0.6931472
    %v331 = vmul.f32 -0.5, %v227
    %v332 = vadd.f32 %v331, 1.0
    %v333 = vmul.f32 %v332, %v227
    %v334 = vand.u32 2147483647, %v227
    %vm335 = vcmp.lt.f32.partialorder %v334, 0.0004427343
    %v336 = vsel %vm335, %v333, %v330
    %v337 = vadd.f32 %v229, 1.0
    %v338 = vlog2.pop %v337
    %v339 = vmul.f32 %v338, 0.6931472
    %v340 = vmul.f32 -0.5, %v229
    %v341 = vadd.f32 %v340, 1.0
    %v342 = vmul.f32 %v341, %v229
    %v343 = vand.u32 2147483647, %v229
    %vm344 = vcmp.lt.f32.partialorder %v343, 0.0004427343
    %v345 = vsel %vm344, %v342, %v339
    %v346 = vadd.f32 %v231, 1.0
    %v347 = vlog2.pop %v346
    %v348 = vmul.f32 %v347, 0.6931472
    %v349 = vmul.f32 -0.5, %v231
    %v350 = vadd.f32 %v349, 1.0
    %v351 = vmul.f32 %v350, %v231
    %v352 = vand.u32 2147483647, %v231
    %vm353 = vcmp.lt.f32.partialorder %v352, 0.0004427343
    %v354 = vsel %vm353, %v351, %v348
    %v355 = vadd.f32 %v233, 1.0
    %v356 = vlog2.pop %v355
    %v357 = vmul.f32 %v356, 0.6931472
    %v358 = vmul.f32 -0.5, %v233
    %v359 = vadd.f32 %v358, 1.0
    %v360 = vmul.f32 %v359, %v233
    %v361 = vand.u32 2147483647, %v233
    %vm362 = vcmp.lt.f32.partialorder %v361, 0.0004427343
    %v363 = vsel %vm362, %v360, %v357
    %v364 = vadd.f32 %v235, 1.0
    %v365 = vlog2.pop %v364
    %v366 = vmul.f32 %v365, 0.6931472
    %v367 = vmul.f32 -0.5, %v235
    %v368 = vadd.f32 %v367, 1.0
    %v369 = vmul.f32 %v368, %v235
    %v370 = vand.u32 2147483647, %v235
    %vm371 = vcmp.lt.f32.partialorder %v370, 0.0004427343
    %v372 = vsel %vm371, %v369, %v366
    %v373 = vadd.f32 %v237, 1.0
    %v374 = vlog2.pop %v373
    %v375 = vmul.f32 %v374, 0.6931472
    %v376 = vmul.f32 -0.5, %v237
    %v377 = vadd.f32 %v376, 1.0
    %v378 = vmul.f32 %v377, %v237
    %v379 = vand.u32 2147483647, %v237
    %vm380 = vcmp.lt.f32.partialorder %v379, 0.0004427343
    %v381 = vsel %vm380, %v378, %v375
    %v382 = vadd.f32 %v158, %v246
    %v383 = vadd.f32 %v159, %v255
    %v384 = vadd.f32 %v160, %v264
    %v385 = vadd.f32 %v161, %v273
    %v386 = vadd.f32 %v162, %v282
    %v387 = vadd.f32 %v163, %v291
    %v388 = vadd.f32 %v164, %v300
    %v389 = vadd.f32 %v165, %v309
    %v390 = vadd.f32 %v166, %v318
    %v391 = vadd.f32 %v167, %v327
    %v392 = vadd.f32 %v168, %v336
    %v393 = vadd.f32 %v169, %v345
    %v394 = vadd.f32 %v170, %v354
    %v395 = vadd.f32 %v171, %v363
    %v396 = vadd.f32 %v172, %v372
    %v397 = vadd.f32 %v173, %v381
    %v398 = vmul.f32 %v382, %v110
    %v399 = vmul.f32 %v383, %v111
    %v400 = vmul.f32 %v384, %v112
    %v401 = vmul.f32 %v385, %v113
    %v402 = vmul.f32 %v386, %v114
    %v403 = vmul.f32 %v387, %v115
    %v404 = vmul.f32 %v388, %v116
    %v405 = vmul.f32 %v389, %v117
    %v406 = vmul.f32 %v390, %v118
    %v407 = vmul.f32 %v391, %v119
    %v408 = vmul.f32 %v392, %v120
    %v409 = vmul.f32 %v393, %v121
    %v410 = vmul.f32 %v394, %v122
    %v411 = vmul.f32 %v395, %v123
    %v412 = vmul.f32 %v396, %v124
    %v413 = vmul.f32 %v397, %v125
    %v414 = vadd.f32 %v398, %v402
    %v415 = vadd.f32 %v414, %v406
    %v416 = vadd.f32 %v415, %v410
    %v417 = vadd.f32 %v399, %v403
    %v418 = vadd.f32 %v417, %v407
    %v419 = vadd.f32 %v418, %v411
    %v420 = vadd.f32 %v400, %v404
    %v421 = vadd.f32 %v420, %v408
    %v422 = vadd.f32 %v421, %v412
    %v423 = vadd.f32 %v401, %v405
    %v424 = vadd.f32 %v423, %v409
    %v425 = vadd.f32 %v424, %v413
    %426 = vst [vmem:[#allocation8] sm:$0xff] %v416
    %427 = vst [vmem:[#allocation8 + $0x8] sm:$0xff] %v419
    %428 = vst [vmem:[#allocation8 + $0x10] sm:$0xff] %v422
    %429 = vst [vmem:[#allocation8 + $0x18] sm:$0xff] %v425
    // Predicated region
    $region26: #{tpu_custom_call.1} parent=1 // pred_check
      _
    $region27: #{tpu_custom_call.1} parent=1 // pred_check_branch
      %431 = sbr.rel (0) target = $region29
    $region28: #{tpu_custom_call.1} parent=1 // pred_region
      %433 = vsyncadd [#allocation4], 0
      %s435 = sshll.u32 [#allocation8], 4
      %s436 = int_to_ptr.vmem [resolvable:$true] %s435
      %s437 = sshll.u32 %s3, 4
      %s438 = int_to_ptr.hbm [resolvable:$true] %s437
      %440 = dma.vmem_to_hbm [thread:$0]  %s436, 512, %s438, [#allocation4]
    $region29: #{tpu_custom_call.1} parent=1 // pred_fallthru
      _
    // Predicated region
    $region30: #{tpu_custom_call.1} parent=1 // pred_check
      _
    $region31: #{tpu_custom_call.1} parent=1 // pred_check_branch
      %442 = sbr.rel (0) target = $region33
    $region32: #{tpu_custom_call.1} parent=1 // pred_region
      %444 = dma.done [#allocation4], 512
    $region33: #{tpu_custom_call.1} parent=1 // pred_fallthru
      _
    %445 = vsyncpa [#allocation3], 1
    %446 = vsyncpa [#allocation6], 1
    %447 = vsyncpa [#allocation4], 1

</llo_original>
